<compile_context>
chip_gen: v7x
topology: tpu7x:2x2x1
jax: 0.10.0
libtpu: 0.0.40
codegen_flags: <defaults>
</compile_context>

<pallas_src>
import jax
import jax.numpy as jnp
from jax.experimental import pallas as pl
from jax.experimental.pallas import tpu as pltpu


def _round_up(x, m):
    return (x + m - 1) // m * m


def _lstm_cell_kernel(x_ref, h_ref, c_ref, w_ref, b_ref,
                      h_out_ref, c_out_ref, cat_ref):
    Hp = h_ref.shape[-1]          # padded hidden width (multiple of 128)

    # Assemble [h | x] in VMEM (lane-aligned tile copies) so a single fused
    # K=(Hp+Ip) matmul produces all four gate pre-activations in one MXU pass.
    cat_ref[:, :Hp] = h_ref[...]          # bf16
    cat_ref[:, Hp:] = x_ref[...]          # bf16

    # Fused gate pre-activations (Bt, 4Hp), f32 accumulation, gate order
    # [forget, input, output, candidate] along the 4Hp axis.
    z = (jnp.dot(cat_ref[...], w_ref[...], preferred_element_type=jnp.float32)
         + b_ref[...])

    # Slab activations: one sigmoid over the first 3 gates, one tanh over the
    # candidate gate; all slices are 128-lane aligned (Hp % 128 == 0).
    s = jax.nn.sigmoid(z[:, :3 * Hp])
    g_t = jnp.tanh(z[:, 3 * Hp:])
    f_t = s[:, 0 * Hp:1 * Hp]             # sigmoid1 (forget)
    i_t = s[:, 1 * Hp:2 * Hp]             # sigmoid2 (input)
    o_t = s[:, 2 * Hp:3 * Hp]             # sigmoid3 (output)

    # c = c * forget + i_t * c_t ;  h = sigmoid3 * tanh(c)   (all f32)
    c_new = c_ref[...] * f_t + i_t * g_t
    h_new = o_t * jnp.tanh(c_new)

    h_out_ref[...] = h_new.astype(h_out_ref.dtype)   # bf16, lane-dense store
    c_out_ref[...] = c_new                           # f32, lane-dense store


def fuse_params(params, input_size, hidden_size):
    """Fuse the four per-gate (H+I, H) weights into one lane-padded operand.

    Returns W: (Hp+Ip, 4Hp) bf16 and b: (1, 4Hp) f32, padded with zeros so
    Hp, Ip are multiples of 128.  Rows 0:H multiply h, rows Hp:Hp+I multiply x
    (cat order = [h, x]); gate order along columns is [f, i, o, g].
    """
    H, I = hidden_size, input_size
    Hp = _round_up(H, 128)
    Ip = _round_up(I, 128)
    w = jnp.zeros((Hp + Ip, 4 * Hp), jnp.float32)
    b = jnp.zeros((1, 4 * Hp), jnp.float32)
    for idx, name in enumerate(("f", "i", "o", "g")):
        wg = params[f"W_{name}"]        # (H+I, H)
        bg = params[f"b_{name}"]        # (1, H)
        col = idx * Hp
        w = w.at[:H, col:col + H].set(wg[:H, :])          # h rows
        w = w.at[Hp:Hp + I, col:col + H].set(wg[H:, :])   # x rows
        b = b.at[:, col:col + H].set(bg)
    return {"W": w.astype(jnp.bfloat16), "b": b,
            "H": H, "I": I, "Hp": Hp, "Ip": Ip}


def _batch_tiling(B):
    """Pick (b_tile, padded_B): sublane-multiple tiles, <=256 rows, >=2 steps."""
    tile = min(256, max(8, _round_up(pl.cdiv(B, 2), 8)))
    Bp = max(_round_up(B, tile), 2 * tile)   # >=2 grid steps (v7x: 2 TCs)
    return tile, Bp


def lstm_cell_forward(x, fused, hidden=None):
    """Pallas LSTM cell. Returns (h, (h, c)) like the PyTorch module.

    h is returned in bfloat16 (it is consumed in bf16 by the next step's
    matmul anyway); c stays float32.
    """
    B, I = x.shape
    H, Hp, Ip = fused["H"], fused["Hp"], fused["Ip"]
    assert I == fused["I"]

    if hidden is None:
        h = jnp.zeros((B, H), jnp.float32)
        c = jnp.zeros((B, H), jnp.float32)
    else:
        h, c = hidden

    b_tile, Bp = _batch_tiling(B)
    grid = (Bp // b_tile,)

    # bf16 activation I/O; zero-pad batch rows and feature columns to the
    # lane/sublane-aligned padded shapes (padded gate columns stay exactly 0).
    x_p = jnp.pad(x.astype(jnp.bfloat16), ((0, Bp - B), (0, Ip - I)))
    h_p = jnp.pad(h.astype(jnp.bfloat16), ((0, Bp - B), (0, Hp - H)))
    c_p = jnp.pad(c.astype(jnp.float32), ((0, Bp - B), (0, Hp - H)))

    def batch_spec(d):
        return pl.BlockSpec((b_tile, d), lambda i: (i, 0))

    w_spec = pl.BlockSpec((Hp + Ip, 4 * Hp), lambda i: (0, 0))   # resident
    b_spec = pl.BlockSpec((1, 4 * Hp), lambda i: (0, 0))         # resident

    cost = pl.CostEstimate(
        flops=2 * Bp * (Hp + Ip) * 4 * Hp,
        transcendentals=5 * Bp * Hp,
        bytes_accessed=(x_p.size * 2 + h_p.size * 2 + c_p.size * 4   # inputs
                        + Bp * Hp * 2 + Bp * Hp * 4                  # outputs
                        + fused["W"].size * 2 + fused["b"].size * 4))

    h_new, c_new = pl.pallas_call(
        _lstm_cell_kernel,
        out_shape=(
            jax.ShapeDtypeStruct((Bp, Hp), jnp.bfloat16),   # h_out (bf16)
            jax.ShapeDtypeStruct((Bp, Hp), jnp.float32),    # c_out (f32)
        ),
        grid=grid,
        in_specs=[
            batch_spec(Ip),   # x  (bf16)
            batch_spec(Hp),   # h  (bf16)
            batch_spec(Hp),   # c  (f32)
            w_spec,           # W  (bf16, constant across the grid)
            b_spec,           # b  (f32,  constant across the grid)
        ],
        out_specs=(
            batch_spec(Hp),   # h_out
            batch_spec(Hp),   # c_out
        ),
        scratch_shapes=[pltpu.VMEM((b_tile, Hp + Ip), jnp.bfloat16)],  # [h|x]
        input_output_aliases={1: 0, 2: 1},   # h, c written back in place (P8)
        compiler_params=pltpu.CompilerParams(
            dimension_semantics=("parallel",),
            # > v5e's 16 MiB scoped default, comfortably under every chip's
            # physical VMEM (128/128/64 MiB).
            vmem_limit_bytes=48 * 1024 * 1024),
        cost_estimate=cost,
    )(x_p, h_p, c_p, fused["W"], fused["b"])

    h_out = h_new[:B, :H]
    c_out = c_new[:B, :H]
    return h_out, (h_out, c_out)


def init_params(key, input_size, hidden_size):
    """Deterministic synthetic parameters for the four RNNGate linears.

    Weights are (H+I, H) stored input-major (torch Linear weight.T), biases
    are (1, H).
    """
    C = input_size + hidden_size
    keys = jax.random.split(key, 8)
    scale = 1.0 / jnp.sqrt(jnp.float32(C))
    mk_w = lambda k: (jax.random.uniform(k, (C, hidden_size), jnp.float32,
                                         minval=-1.0, maxval=1.0) * scale)
    mk_b = lambda k: (jax.random.uniform(k, (1, hidden_size), jnp.float32,
                                         minval=-1.0, maxval=1.0) * scale)
    return {
        "W_f": mk_w(keys[0]), "b_f": mk_b(keys[1]),   # sigmoid1 (forget)
        "W_i": mk_w(keys[2]), "b_i": mk_b(keys[3]),   # sigmoid2 (input)
        "W_o": mk_w(keys[4]), "b_o": mk_b(keys[5]),   # sigmoid3 (output)
        "W_g": mk_w(keys[6]), "b_g": mk_b(keys[7]),   # tanh4    (candidate)
    }


def lstm_cell_reference(x, params, hidden=None, matmul_dtype=jnp.float32):
    """Pure-JAX reference mirroring the PyTorch forward.

    With matmul_dtype=bfloat16 it mirrors the kernel's numerics (bf16 matmul
    operands, f32 accumulation); with float32 it is the exact module math.
    """
    B = x.shape[0]
    H = params["b_f"].shape[-1]
    if hidden is None:
        h = jnp.zeros((B, H), jnp.float32)
        c = jnp.zeros((B, H), jnp.float32)
    else:
        h, c = hidden
    cat = jnp.concatenate([h, x], axis=-1)

    def gate(w, b, act):
        pre = jnp.dot(cat.astype(matmul_dtype), w.astype(matmul_dtype),
                      preferred_element_type=jnp.float32) + b
        return act(pre)

    f_t = gate(params["W_f"], params["b_f"], jax.nn.sigmoid)
    i_t = gate(params["W_i"], params["b_i"], jax.nn.sigmoid)
    o_t = gate(params["W_o"], params["b_o"], jax.nn.sigmoid)
    g_t = gate(params["W_g"], params["b_g"], jnp.tanh)
    c = c * f_t + i_t * g_t
    h = o_t * jnp.tanh(c)
    return h, (h, c)


if __name__ == "__main__":
    batch = 8
    input_size = 16
    hidden_size = 32

    key = jax.random.PRNGKey(0)
    k_x, k_h, k_c, k_p = jax.random.split(key, 4)

    x = jax.random.normal(k_x, (batch, input_size), jnp.float32)
    h0 = jax.random.normal(k_h, (batch, hidden_size), jnp.float32)
    c0 = jax.random.normal(k_c, (batch, hidden_size), jnp.float32)
    params = init_params(k_p, input_size, hidden_size)
    fused = fuse_params(params, input_size, hidden_size)

    # Run once with hidden=None (zero init) and once with an explicit hidden.
    h_a, (_, c_a) = lstm_cell_forward(x, fused, hidden=None)
    h_b, (_, c_b) = lstm_cell_forward(x, fused, hidden=(h0, c0))
    jax.block_until_ready((h_a, c_a, h_b, c_b))

    # Tight check vs. a reference mirroring the kernel numerics (bf16 matmul
    # operands, f32 accumulation).  h is emitted in bf16 -> bf16-level atol.
    hr_a, (_, cr_a) = lstm_cell_reference(x, params, None, jnp.bfloat16)
    hr_b, (_, cr_b) = lstm_cell_reference(x, params, (h0, c0), jnp.bfloat16)
    assert jnp.allclose(h_a.astype(jnp.float32), hr_a, atol=1e-2, rtol=1e-2)
    assert jnp.allclose(c_a, cr_a, atol=1e-4, rtol=1e-4)
    assert jnp.allclose(h_b.astype(jnp.float32), hr_b, atol=1e-2, rtol=1e-2)
    assert jnp.allclose(c_b, cr_b, atol=1e-4, rtol=1e-4)

    # Looser sanity check vs. the exact full-f32 PyTorch math (bf16 weight /
    # activation cast is the only approximation).
    hf_b, (_, cf_b) = lstm_cell_reference(x, params, (h0, c0), jnp.float32)
    assert jnp.allclose(h_b.astype(jnp.float32), hf_b, atol=3e-2, rtol=3e-2)
    assert jnp.allclose(c_b, cf_b, atol=3e-2, rtol=3e-2)

    print("KERNEL_OK")
</pallas_src>

<mosaic_0001>
module attributes {stable_mosaic.version = 11 : i64} {
  func.func @_lstm_cell_kernel(%arg0: i32, %arg1: memref<8x128xbf16, #tpu.memory_space<vmem>>, %arg2: memref<8x128xbf16, #tpu.memory_space<vmem>>, %arg3: memref<8x128xf32, #tpu.memory_space<vmem>>, %arg4: memref<256x512xbf16, #tpu.memory_space<vmem>>, %arg5: memref<1x512xf32, #tpu.memory_space<vmem>>, %arg6: memref<8x128xbf16, #tpu.memory_space<vmem>>, %arg7: memref<8x128xf32, #tpu.memory_space<vmem>>, %arg8: memref<8x256xbf16, #tpu.memory_space<vmem>>) attributes {dimension_semantics = [#tpu.dimension_semantics<parallel>], iteration_bounds = array<i64: 2>, scalar_prefetch = 0 : i64, scratch_operands = 1 : i64, tpu.core_type = #tpu.core_type<tc>, window_params = [{transform_indices = @transform_0, window_bounds = array<i64: 8, 128>}, {transform_indices = @transform_1, window_bounds = array<i64: 8, 128>}, {transform_indices = @transform_2, window_bounds = array<i64: 8, 128>}, {pipeline_mode = #tpu.pipeline_mode<synchronous>, transform_indices = @transform_3, window_bounds = array<i64: 256, 512>}, {pipeline_mode = #tpu.pipeline_mode<synchronous>, transform_indices = @transform_4, window_bounds = array<i64: 1, 512>}, {transform_indices = @transform_5, window_bounds = array<i64: 8, 128>}, {transform_indices = @transform_6, window_bounds = array<i64: 8, 128>}]} {
    %c0 = arith.constant 0 : index
    %c0_0 = arith.constant 0 : index
    %0 = vector.load %arg2[%c0, %c0_0] : memref<8x128xbf16, #tpu.memory_space<vmem>>, vector<8x128xbf16>
    %c0_1 = arith.constant 0 : index
    %c0_2 = arith.constant 0 : index
    %1 = vector.load %arg8[%c0_1, %c0_2] : memref<8x256xbf16, #tpu.memory_space<vmem>>, vector<8x128xbf16>
    tpu.vector_store %arg8[%c0_1, %c0_2], %0 {strides = array<i32>} : memref<8x256xbf16, #tpu.memory_space<vmem>>, vector<8x128xbf16>,
    %c0_3 = arith.constant 0 : index
    %c0_4 = arith.constant 0 : index
    %2 = vector.load %arg1[%c0_3, %c0_4] : memref<8x128xbf16, #tpu.memory_space<vmem>>, vector<8x128xbf16>
    %c0_5 = arith.constant 0 : index
    %c128 = arith.constant 128 : index
    %3 = vector.load %arg8[%c0_5, %c128] : memref<8x256xbf16, #tpu.memory_space<vmem>>, vector<8x128xbf16>
    tpu.vector_store %arg8[%c0_5, %c128], %2 {strides = array<i32>} : memref<8x256xbf16, #tpu.memory_space<vmem>>, vector<8x128xbf16>,
    %c0_6 = arith.constant 0 : index
    %c0_7 = arith.constant 0 : index
    %4 = vector.load %arg8[%c0_6, %c0_7] : memref<8x256xbf16, #tpu.memory_space<vmem>>, vector<8x256xbf16>
    %c0_8 = arith.constant 0 : index
    %c0_9 = arith.constant 0 : index
    %5 = vector.load %arg4[%c0_8, %c0_9] : memref<256x512xbf16, #tpu.memory_space<vmem>>, vector<256x512xbf16>
    %cst = arith.constant dense<0.000000e+00> : vector<8x512xf32>
    %6 = tpu.matmul %4, %5, %cst {dimension_numbers = #tpu.dot_dimension_numbers<[1], [0], [0], [1], [0, 0, 1, 1], [], []>} : vector<8x256xbf16>, vector<256x512xbf16>, vector<8x512xf32> -> vector<8x512xf32>
    %c0_10 = arith.constant 0 : index
    %c0_11 = arith.constant 0 : index
    %7 = vector.load %arg5[%c0_10, %c0_11] : memref<1x512xf32, #tpu.memory_space<vmem>>, vector<1x512xf32>
    %8 = vector.broadcast %7 : vector<1x512xf32> to vector<8x512xf32>
    %9 = arith.addf %6, %8 : vector<8x512xf32>
    %10 = vector.extract_strided_slice %9 {offsets = [0, 0], sizes = [8, 384], strides = [1, 1]} : vector<8x512xf32> to vector<8x384xf32>
    %11 = arith.negf %10 : vector<8x384xf32>
    %12 = math.exp %11 : vector<8x384xf32>
    %cst_12 = arith.constant 1.000000e+00 : f32
    %13 = vector.broadcast %cst_12 : f32 to vector<8x384xf32>
    %14 = arith.addf %13, %12 : vector<8x384xf32>
    %15 = arith.divf %13, %14 : vector<8x384xf32>
    %16 = vector.extract_strided_slice %9 {offsets = [0, 384], sizes = [8, 128], strides = [1, 1]} : vector<8x512xf32> to vector<8x128xf32>
    %17 = math.tanh %16 : vector<8x128xf32>
    %18 = vector.extract_strided_slice %15 {offsets = [0, 0], sizes = [8, 128], strides = [1, 1]} : vector<8x384xf32> to vector<8x128xf32>
    %19 = vector.extract_strided_slice %15 {offsets = [0, 128], sizes = [8, 128], strides = [1, 1]} : vector<8x384xf32> to vector<8x128xf32>
    %20 = vector.extract_strided_slice %15 {offsets = [0, 256], sizes = [8, 128], strides = [1, 1]} : vector<8x384xf32> to vector<8x128xf32>
    %c0_13 = arith.constant 0 : index
    %c0_14 = arith.constant 0 : index
    %21 = vector.load %arg3[%c0_13, %c0_14] : memref<8x128xf32, #tpu.memory_space<vmem>>, vector<8x128xf32>
    %22 = arith.mulf %21, %18 : vector<8x128xf32>
    %23 = arith.mulf %19, %17 : vector<8x128xf32>
    %24 = arith.addf %22, %23 : vector<8x128xf32>
    %25 = math.tanh %24 : vector<8x128xf32>
    %26 = arith.mulf %20, %25 : vector<8x128xf32>
    %27 = arith.truncf %26 : vector<8x128xf32> to vector<8x128xbf16>
    %c0_15 = arith.constant 0 : index
    %c0_16 = arith.constant 0 : index
    %28 = vector.load %arg6[%c0_15, %c0_16] : memref<8x128xbf16, #tpu.memory_space<vmem>>, vector<8x128xbf16>
    tpu.vector_store %arg6[%c0_15, %c0_16], %27 {strides = array<i32>} : memref<8x128xbf16, #tpu.memory_space<vmem>>, vector<8x128xbf16>,
    %c0_17 = arith.constant 0 : index
    %c0_18 = arith.constant 0 : index
    %29 = vector.load %arg7[%c0_17, %c0_18] : memref<8x128xf32, #tpu.memory_space<vmem>>, vector<8x128xf32>
    tpu.vector_store %arg7[%c0_17, %c0_18], %24 {strides = array<i32>} : memref<8x128xf32, #tpu.memory_space<vmem>>, vector<8x128xf32>,
    return
  }
  func.func @transform_0(%arg0: i32) -> (i32, i32) {
    %c0_i32 = arith.constant 0 : i32
    %c0_i32_0 = arith.constant 0 : i32
    return %arg0, %c0_i32 : i32, i32
  }
  func.func @transform_1(%arg0: i32) -> (i32, i32) {
    %c0_i32 = arith.constant 0 : i32
    %c0_i32_0 = arith.constant 0 : i32
    return %arg0, %c0_i32 : i32, i32
  }
  func.func @transform_2(%arg0: i32) -> (i32, i32) {
    %c0_i32 = arith.constant 0 : i32
    %c0_i32_0 = arith.constant 0 : i32
    return %arg0, %c0_i32 : i32, i32
  }
  func.func @transform_3(%arg0: i32) -> (i32, i32) {
    %c0_i32 = arith.constant 0 : i32
    %c0_i32_0 = arith.constant 0 : i32
    %c0_i32_1 = arith.constant 0 : i32
    return %c0_i32, %c0_i32_0 : i32, i32
  }
  func.func @transform_4(%arg0: i32) -> (i32, i32) {
    %c0_i32 = arith.constant 0 : i32
    %c0_i32_0 = arith.constant 0 : i32
    %c0_i32_1 = arith.constant 0 : i32
    return %c0_i32, %c0_i32_0 : i32, i32
  }
  func.func @transform_5(%arg0: i32) -> (i32, i32) {
    %c0_i32 = arith.constant 0 : i32
    %c0_i32_0 = arith.constant 0 : i32
    return %arg0, %c0_i32 : i32, i32
  }
  func.func @transform_6(%arg0: i32) -> (i32, i32) {
    %c0_i32 = arith.constant 0 : i32
    %c0_i32_0 = arith.constant 0 : i32
    return %arg0, %c0_i32 : i32, i32
  }
}

</mosaic_0001>

<llo_original>
// kernel: tpu_custom_call.1
$region0: #{tpu_custom_call.1}
  #allocation0 [shape = 'u32[]', space=smem, size = 0x4, offset = 0x4, fixed_abs, tag = 'smem constant byte address 0x4 - core index']
  #allocation1 [shape = 'u32[144,128]{1,0:T(1,128)}', space=vmem, size = 0x12000, scoped, tag = 'internal scratch']
  #allocation2 [shape = 'bf16[8,256]{1,0:T(8,128)(2,1)}', space=vmem, size = 0x1000, scoped, tag = 'scratch operand']
  %s0 = inlined_call_operand.vmem [shape: bf16[16,128], index: 0, kind: input, shape index: {}]
  %s1 = inlined_call_operand.hbm [shape: bf16[16,128], index: 1, kind: input, shape index: {}, may-alias: {1,5}]
  %s2 = inlined_call_operand.hbm [shape: f32[16,128], index: 2, kind: input, shape index: {}, may-alias: {2,6}]
  %s3 = inlined_call_operand.hbm [shape: bf16[256,512], index: 3, kind: input, shape index: {}]
  %s4 = inlined_call_operand.vmem [shape: f32[1,512], index: 4, kind: input, shape index: {}]
  %s5 = inlined_call_operand.hbm [shape: bf16[16,128], index: 5, kind: output, shape index: {0}, may-alias: {1,5}]
  %s6 = inlined_call_operand.hbm [shape: f32[16,128], index: 6, kind: output, shape index: {1}, may-alias: {2,6}]
  %7 = xla_tuple %s5, %s6
  %s8 = sld [smem:[#allocation0]]
  $region73: #{tpu_custom_call.1} parent=0
    _
  %s10 = ssub.s32 1, %s8
  %s11 = scalar_select 0, %s10, %s8
  $region1: #{tpu_custom_call.1} parent=0
    #allocation3 [shape = 'u8[4096]{0}', space=vmem, size = 0x1000, scoped, tag = 'input window, operand 1']
    #allocation4 [shape = 's32[2]{0}', space=sflag, size = 0x8, scoped, tag = 'scoped memory for tpu_custom_call.1']
    #allocation5 [shape = 's32[2]{0}', space=sflag, size = 0x8, scoped, tag = 'scoped memory for tpu_custom_call.1']
    #allocation6 [shape = 'u8[8192]{0}', space=vmem, size = 0x2000, scoped, tag = 'input window, operand 2']
    #allocation7 [shape = 's32[2]{0}', space=sflag, size = 0x8, scoped, tag = 'scoped memory for tpu_custom_call.1']
    #allocation8 [shape = 'u8[262144]{0}', space=vmem, size = 0x40000, scoped, tag = 'input window, operand 3, single buffered']
    #allocation9 [shape = 'u8[4096]{0}', space=vmem, size = 0x1000, scoped, tag = 'output window, operand 0']
    #allocation10 [shape = 'u8[8192]{0}', space=vmem, size = 0x2000, scoped, tag = 'output window, operand 1']
    #allocation11 [shape = 's32[2]{0}', space=sflag, size = 0x8, scoped, tag = 'scoped memory for tpu_custom_call.1']
    %12 = vsyncpa [#allocation4], 0
    %s13 = scalar_lea.sflag [#allocation4], 1
    %14 = vsyncpa %s13, 0
    %15 = vsyncpa [#allocation7], 0
    %s16 = scalar_lea.sflag [#allocation7], 1
    %17 = vsyncpa %s16, 0
    %18 = vsyncpa [#allocation5], 0
    %s19 = scalar_lea.sflag [#allocation5], 1
    %20 = vsyncpa %s19, 0
    %21 = vsyncpa [#allocation11], 0
    %s22 = scalar_lea.sflag [#allocation11], 1
    %23 = vsyncpa %s22, 0
    loop: start=0, step=1, limit=4
    $region2: #{tpu_custom_call.1} parent=1 // loop_pre_header
      _
    $region3: #{tpu_custom_call.1} parent=1 // loop_header
      %s25 = sphi 0, %s29
      %p26 = scmp.ge.s32.totalorder %s25, 4
      %s35 = sphi 0, %s37
      %s38 = sphi 0, %s35
      %s39 = sphi 0, %s38
      %s55 = sphi 0, %s39
      %s61 = sphi 0, %s63
      %s64 = sphi 0, %s61
      %s65 = sphi 0, %s64
      %s81 = sphi 0, %s65
      %s87 = sphi 0, %s89
      %s90 = sphi 0, %s87
      %s91 = sphi 0, %s90
      %s107 = sphi 0, %s91
      %s111 = sphi 0, %s111
      %s113 = sphi 0, %s111
      %s114 = sphi 0, %s113
      %s128 = sphi 0, %s114
      %s132 = sphi 0, %s132
      %s134 = sphi 0, %s132
      %s135 = sphi 0, %s134
      %s149 = sphi 0, %s135
      %s155 = sphi 0, %s157
      %s158 = sphi 0, %s155
      %s159 = sphi 0, %s158
      %s175 = sphi 0, %s159
      %s181 = sphi 0, %s183
      %s184 = sphi 0, %s181
      %s185 = sphi 0, %s184
      %s201 = sphi 0, %s185
    $region4: #{tpu_custom_call.1} parent=1 // loop_header_branch
      %28 = sbr.rel (%p26) target = $region8
    $region5: #{tpu_custom_call.1} parent=1 // loop_body
      %s30 = ssub.s32 %s25, 1
      %s31 = ssub.s32 %s25, 2
      %s32 = sadd.s32 %s25, 1
      %s33 = ssub.s32 %s25, %s32
      %p34 = scmp.eq.s32.totalorder %s33, 0
      %s36 = sadd.s32 %s35, 1
      %s37 = scalar_select %p34, %s35, %s36
      %p40 = pneg %p34
      %p41 = scmp.eq.s32.totalorder %s25, 1
      %p42 = por %p40, %p41
      %p43 = scmp.ne.s32.totalorder %s35, %s38
      %p44 = scmp.eq.s32.totalorder %s25, 0
      %p45 = por %p43, %p44
      %p46 = scmp.ne.s32.totalorder %s35, %s38
      %p47 = scmp.eq.s32.totalorder %s30, 1
      %p48 = por %p46, %p47
      %p49 = scmp.ne.s32.totalorder %s38, %s39
      %p50 = scmp.eq.s32.totalorder %s30, 0
      %p51 = por %p49, %p50
      %p52 = scmp.ne.s32.totalorder %s38, %s39
      %p53 = scmp.eq.s32.totalorder %s31, 1
      %p54 = por %p52, %p53
      %p56 = scmp.ne.s32.totalorder %s39, %s55
      %p57 = scmp.eq.s32.totalorder %s31, 0
      %p58 = por %p56, %p57
      %s59 = ssub.s32 %s25, %s32
      %p60 = scmp.eq.s32.totalorder %s59, 0
      %s62 = sadd.s32 %s61, 1
      %s63 = scalar_select %p60, %s61, %s62
      %p66 = pneg %p60
      %p67 = scmp.eq.s32.totalorder %s25, 1
      %p68 = por %p66, %p67
      %p69 = scmp.ne.s32.totalorder %s61, %s64
      %p70 = scmp.eq.s32.totalorder %s25, 0
      %p71 = por %p69, %p70
      %p72 = scmp.ne.s32.totalorder %s61, %s64
      %p73 = scmp.eq.s32.totalorder %s30, 1
      %p74 = por %p72, %p73
      %p75 = scmp.ne.s32.totalorder %s64, %s65
      %p76 = scmp.eq.s32.totalorder %s30, 0
      %p77 = por %p75, %p76
      %p78 = scmp.ne.s32.totalorder %s64, %s65
      %p79 = scmp.eq.s32.totalorder %s31, 1
      %p80 = por %p78, %p79
      %p82 = scmp.ne.s32.totalorder %s65, %s81
      %p83 = scmp.eq.s32.totalorder %s31, 0
      %p84 = por %p82, %p83
      %s85 = ssub.s32 %s25, %s32
      %p86 = scmp.eq.s32.totalorder %s85, 0
      %s88 = sadd.s32 %s87, 1
      %s89 = scalar_select %p86, %s87, %s88
      %p92 = pneg %p86
      %p93 = scmp.eq.s32.totalorder %s25, 1
      %p94 = por %p92, %p93
      %p95 = scmp.ne.s32.totalorder %s87, %s90
      %p96 = scmp.eq.s32.totalorder %s25, 0
      %p97 = por %p95, %p96
      %p98 = scmp.ne.s32.totalorder %s87, %s90
      %p99 = scmp.eq.s32.totalorder %s30, 1
      %p100 = por %p98, %p99
      %p101 = scmp.ne.s32.totalorder %s90, %s91
      %p102 = scmp.eq.s32.totalorder %s30, 0
      %p103 = por %p101, %p102
      %p104 = scmp.ne.s32.totalorder %s90, %s91
      %p105 = scmp.eq.s32.totalorder %s31, 1
      %p106 = por %p104, %p105
      %p108 = scmp.ne.s32.totalorder %s91, %s107
      %p109 = scmp.eq.s32.totalorder %s31, 0
      %p110 = por %p108, %p109
      %s112 = sadd.s32 %s111, 1
      %p115 = scmp.eq.s32.totalorder %s25, 1
      %p116 = scmp.ne.s32.totalorder %s111, %s113
      %p117 = scmp.eq.s32.totalorder %s25, 0
      %p118 = por %p116, %p117
      %p119 = scmp.ne.s32.totalorder %s111, %s113
      %p120 = scmp.eq.s32.totalorder %s30, 1
      %p121 = por %p119, %p120
      %p122 = scmp.ne.s32.totalorder %s113, %s114
      %p123 = scmp.eq.s32.totalorder %s30, 0
      %p124 = por %p122, %p123
      %p125 = scmp.ne.s32.totalorder %s113, %s114
      %p126 = scmp.eq.s32.totalorder %s31, 1
      %p127 = por %p125, %p126
      %p129 = scmp.ne.s32.totalorder %s114, %s128
      %p130 = scmp.eq.s32.totalorder %s31, 0
      %p131 = por %p129, %p130
      %s133 = sadd.s32 %s132, 1
      %p136 = scmp.eq.s32.totalorder %s25, 1
      %p137 = scmp.ne.s32.totalorder %s132, %s134
      %p138 = scmp.eq.s32.totalorder %s25, 0
      %p139 = por %p137, %p138
      %p140 = scmp.ne.s32.totalorder %s132, %s134
      %p141 = scmp.eq.s32.totalorder %s30, 1
      %p142 = por %p140, %p141
      %p143 = scmp.ne.s32.totalorder %s134, %s135
      %p144 = scmp.eq.s32.totalorder %s30, 0
      %p145 = por %p143, %p144
      %p146 = scmp.ne.s32.totalorder %s134, %s135
      %p147 = scmp.eq.s32.totalorder %s31, 1
      %p148 = por %p146, %p147
      %p150 = scmp.ne.s32.totalorder %s135, %s149
      %p151 = scmp.eq.s32.totalorder %s31, 0
      %p152 = por %p150, %p151
      %s153 = ssub.s32 %s25, %s32
      %p154 = scmp.eq.s32.totalorder %s153, 0
      %s156 = sadd.s32 %s155, 1
      %s157 = scalar_select %p154, %s155, %s156
      %p160 = pneg %p154
      %p161 = scmp.eq.s32.totalorder %s25, 1
      %p162 = por %p160, %p161
      %p163 = scmp.ne.s32.totalorder %s155, %s158
      %p164 = scmp.eq.s32.totalorder %s25, 0
      %p165 = por %p163, %p164
      %p166 = scmp.ne.s32.totalorder %s155, %s158
      %p167 = scmp.eq.s32.totalorder %s30, 1
      %p168 = por %p166, %p167
      %p169 = scmp.ne.s32.totalorder %s158, %s159
      %p170 = scmp.eq.s32.totalorder %s30, 0
      %p171 = por %p169, %p170
      %p172 = scmp.ne.s32.totalorder %s158, %s159
      %p173 = scmp.eq.s32.totalorder %s31, 1
      %p174 = por %p172, %p173
      %p176 = scmp.ne.s32.totalorder %s159, %s175
      %p177 = scmp.eq.s32.totalorder %s31, 0
      %p178 = por %p176, %p177
      %s179 = ssub.s32 %s25, %s32
      %p180 = scmp.eq.s32.totalorder %s179, 0
      %s182 = sadd.s32 %s181, 1
      %s183 = scalar_select %p180, %s181, %s182
      %p186 = pneg %p180
      %p187 = scmp.eq.s32.totalorder %s25, 1
      %p188 = por %p186, %p187
      %p189 = scmp.ne.s32.totalorder %s181, %s184
      %p190 = scmp.eq.s32.totalorder %s25, 0
      %p191 = por %p189, %p190
      %p192 = scmp.ne.s32.totalorder %s181, %s184
      %p193 = scmp.eq.s32.totalorder %s30, 1
      %p194 = por %p192, %p193
      %p195 = scmp.ne.s32.totalorder %s184, %s185
      %p196 = scmp.eq.s32.totalorder %s30, 0
      %p197 = por %p195, %p196
      %p198 = scmp.ne.s32.totalorder %s184, %s185
      %p199 = scmp.eq.s32.totalorder %s31, 1
      %p200 = por %p198, %p199
      %p202 = scmp.ne.s32.totalorder %s185, %s201
      %p203 = scmp.eq.s32.totalorder %s31, 0
      %p204 = por %p202, %p203
      %p205 = scmp.le.s32.totalorder 1, %s25
      %p206 = scmp.lt.s32.totalorder %s25, 3
      %p207 = pnand %p205, %p206
      %p208 = pneg %p207
      // Predicated region
      $region9: #{tpu_custom_call.1} parent=5 // pred_check
        _
      $region10: #{tpu_custom_call.1} parent=5 // pred_check_branch
        %210 = sbr.rel (%p207) target = $region12
      $region11: #{tpu_custom_call.1} parent=5 // pred_region
        %s211 = ssub.s32 %s25, 1
        // Predicated region
        $region13: #{tpu_custom_call.1} parent=11 // pred_check
          %p212 = pneg %p124
        $region14: #{tpu_custom_call.1} parent=11 // pred_check_branch
          %214 = sbr.rel (%p212) target = $region16
        $region15: #{tpu_custom_call.1} parent=11 // pred_region
          %s216 = ssub.s32 8192, 8192
          %217 = vsyncadd [#allocation7], %s216
          %s218 = sshll.u32 [#allocation8], 4
          %s219 = int_to_ptr.vmem [resolvable:$true] %s218
          %224 = dma.hbm_to_vmem [thread:$0]  %s3, 8192, %s219, [#allocation7], 256, 256, 16
        $region16: #{tpu_custom_call.1} parent=11 // pred_fallthru
          _
        // Predicated region
        $region17: #{tpu_custom_call.1} parent=11 // pred_check
          %p225 = pneg %p145
        $region18: #{tpu_custom_call.1} parent=11 // pred_check_branch
          %227 = sbr.rel (%p225) target = $region20
        $region19: #{tpu_custom_call.1} parent=11 // pred_region
          _
        $region20: #{tpu_custom_call.1} parent=11 // pred_fallthru
          _
      $region12: #{tpu_custom_call.1} parent=5 // pred_fallthru
        _
      %p228 = scmp.lt.s32.totalorder %s25, 2
      // Predicated region
      $region21: #{tpu_custom_call.1} parent=5 // pred_check
        %p229 = pneg %p228
      $region22: #{tpu_custom_call.1} parent=5 // pred_check_branch
        %231 = sbr.rel (%p229) target = $region24
      $region23: #{tpu_custom_call.1} parent=5 // pred_region
        // Predicated region
        $region25: #{tpu_custom_call.1} parent=23 // pred_check
          %p232 = pneg %p45
        $region26: #{tpu_custom_call.1} parent=23 // pred_check_branch
          %234 = sbr.rel (%p232) target = $region28
        $region27: #{tpu_custom_call.1} parent=23 // pred_region
          %p235 = scmp.lt.s32.totalorder %s25, 1
          %s236 = scalar_select %p235, %s25, 1
          %s237 = smul.addr %s236, 4
          %s238 = scalar_lea.vmem %s0, %s237
        $region28: #{tpu_custom_call.1} parent=23 // pred_fallthru
          _
        // Predicated region
        $region29: #{tpu_custom_call.1} parent=23 // pred_check
          %p239 = pneg %p71
        $region30: #{tpu_custom_call.1} parent=23 // pred_check_branch
          %241 = sbr.rel (%p239) target = $region32
        $region31: #{tpu_custom_call.1} parent=23 // pred_region
          %s242 = sand.u32 %s61, 1
          %s243 = scalar_lea.sflag [#allocation4], %s242
          %s244 = sand.u32 %s61, 1
          %s245 = smul.addr %s244, 4
          %s246 = scalar_lea.vmem [#allocation3], %s245
          %s248 = ssub.s32 64, 64
          %249 = vsyncadd %s243, %s248
          %s250 = smul.addr %s25, 64
          %s251 = scalar_lea.hbm %s1, %s250
          %s253 = sshll.u32 %s246, 4
          %s254 = int_to_ptr.vmem [resolvable:$true] %s253
          %256 = dma.hbm_to_vmem [thread:$0]  %s251, 64, %s254, %s243
        $region32: #{tpu_custom_call.1} parent=23 // pred_fallthru
          _
        // Predicated region
        $region33: #{tpu_custom_call.1} parent=23 // pred_check
          %p257 = pneg %p97
        $region34: #{tpu_custom_call.1} parent=23 // pred_check_branch
          %259 = sbr.rel (%p257) target = $region36
        $region35: #{tpu_custom_call.1} parent=23 // pred_region
          %s260 = sand.u32 %s25, 1
          %s261 = scalar_lea.sflag [#allocation7], %s260
          %s262 = sand.u32 %s87, 1
          %s263 = smul.addr %s262, 8
          %s264 = scalar_lea.vmem [#allocation6], %s263
          %s266 = ssub.s32 128, 128
          %267 = vsyncadd %s261, %s266
          %s268 = smul.addr %s25, 128
          %s269 = scalar_lea.hbm %s2, %s268
          %s271 = sshll.u32 %s264, 4
          %s272 = int_to_ptr.vmem [resolvable:$true] %s271
          %274 = dma.hbm_to_vmem [thread:$0]  %s269, 128, %s272, %s261
        $region36: #{tpu_custom_call.1} parent=23 // pred_fallthru
          _
      $region24: #{tpu_custom_call.1} parent=5 // pred_fallthru
        _
      %p275 = scmp.le.s32.totalorder 1, %s25
      %p276 = scmp.lt.s32.totalorder %s25, 3
      %p277 = pnand %p275, %p276
      %p278 = pneg %p277
      // Predicated region
      $region37: #{tpu_custom_call.1} parent=5 // pred_check
        _
      $region38: #{tpu_custom_call.1} parent=5 // pred_check_branch
        %280 = sbr.rel (%p277) target = $region40
      $region39: #{tpu_custom_call.1} parent=5 // pred_region
        %s281 = ssub.s32 %s25, 1
        %s282 = sand.u32 %s64, 1
        %s283 = scalar_lea.sflag [#allocation4], %s282
        %s284 = sand.u32 %s64, 1
        %s285 = smul.addr %s284, 4
        %s286 = scalar_lea.vmem [#allocation3], %s285
        // Predicated region
        $region41: #{tpu_custom_call.1} parent=39 // pred_check
          %p287 = pneg %p77
        $region42: #{tpu_custom_call.1} parent=39 // pred_check_branch
          %289 = sbr.rel (%p287) target = $region44
        $region43: #{tpu_custom_call.1} parent=39 // pred_region
          %290 = dma.done %s283, 64
        $region44: #{tpu_custom_call.1} parent=39 // pred_fallthru
          _
        %s291 = sand.u32 %s30, 1
        %s292 = scalar_lea.sflag [#allocation7], %s291
        %s293 = sand.u32 %s90, 1
        %s294 = smul.addr %s293, 8
        %s295 = scalar_lea.vmem [#allocation6], %s294
        // Predicated region
        $region45: #{tpu_custom_call.1} parent=39 // pred_check
          %p296 = pneg %p103
        $region46: #{tpu_custom_call.1} parent=39 // pred_check_branch
          %298 = sbr.rel (%p296) target = $region48
        $region47: #{tpu_custom_call.1} parent=39 // pred_region
          %299 = dma.done %s292, 128
        $region48: #{tpu_custom_call.1} parent=39 // pred_fallthru
          _
        // Predicated region
        $region49: #{tpu_custom_call.1} parent=39 // pred_check
          %p300 = pneg %p124
        $region50: #{tpu_custom_call.1} parent=39 // pred_check_branch
          %302 = sbr.rel (%p300) target = $region52
        $region51: #{tpu_custom_call.1} parent=39 // pred_region
          %303 = dma.done [#allocation7], 8192
        $region52: #{tpu_custom_call.1} parent=39 // pred_fallthru
          _
        %p304 = scmp.lt.s32.totalorder %s30, 1
        %s305 = scalar_select %p304, %s30, 1
        %s306 = smul.addr %s305, 4
        %s307 = scalar_lea.vmem %s0, %s306
        %p308 = pneg %p51
        %p309 = pneg %p48
        %s310 = sand.u32 %s64, 1
        %s311 = scalar_lea.sflag [#allocation4], %s310
        %s312 = sand.u32 %s64, 1
        %s313 = smul.addr %s312, 4
        %s314 = scalar_lea.vmem [#allocation3], %s313
        %p315 = pneg %p77
        %p316 = pneg %p74
        %s317 = sand.u32 %s30, 1
        %s318 = scalar_lea.sflag [#allocation7], %s317
        %s319 = sand.u32 %s90, 1
        %s320 = smul.addr %s319, 8
        %s321 = scalar_lea.vmem [#allocation6], %s320
        %p322 = pneg %p103
        %p323 = pneg %p100
        %p324 = pneg %p124
        %p325 = pneg %p121
        %p326 = pneg %p145
        %p327 = pneg %p142
        %p328 = pneg %p171
        %p329 = pneg %p168
        %s330 = sand.u32 %s158, 1
        %s331 = scalar_lea.sflag [#allocation5], %s330
        %s332 = sand.u32 %s158, 1
        %s333 = smul.addr %s332, 4
        %s334 = scalar_lea.vmem [#allocation9], %s333
        %p335 = pneg %p197
        %p336 = pneg %p194
        %s337 = sand.u32 %s184, 1
        %s338 = scalar_lea.sflag [#allocation11], %s337
        %s339 = sand.u32 %s184, 1
        %s340 = smul.addr %s339, 8
        %s341 = scalar_lea.vmem [#allocation10], %s340
        %p342 = scmp.lt.s32.totalorder %s30, 1
        %s343 = scalar_select %p342, %s30, 1
        %s344 = smul.addr %s343, 4
        %s345 = scalar_lea.vmem %s0, %s344
        %v346 = vld [vmem:[%s286] sm:$0xf]
        %347 = vst [vmem:[#allocation2] sm:$0xf] %v346
        %v348 = vld [vmem:[%s345] sm:$0xf]
        %349 = vst [vmem:[#allocation2 + $0x4] sm:$0xf] %v348
        %v350 = vld [vmem:[#allocation2] sm:$0xff]
        %v351 = vld [vmem:[#allocation8] sm:$0xff]
        %v352 = vld [vmem:[#allocation8 + $0x8] sm:$0xff]
        %v353 = vld [vmem:[#allocation8 + $0x10] sm:$0xff]
        %v354 = vld [vmem:[#allocation8 + $0x18] sm:$0xff]
        %v355 = vld [vmem:[#allocation8 + $0x20] sm:$0xff]
        %v356 = vld [vmem:[#allocation8 + $0x28] sm:$0xff]
        %v357 = vld [vmem:[#allocation8 + $0x30] sm:$0xff]
        %v358 = vld [vmem:[#allocation8 + $0x38] sm:$0xff]
        %v359 = vld [vmem:[#allocation8 + $0x40] sm:$0xff]
        %v360 = vld [vmem:[#allocation8 + $0x48] sm:$0xff]
        %v361 = vld [vmem:[#allocation8 + $0x50] sm:$0xff]
        %v362 = vld [vmem:[#allocation8 + $0x58] sm:$0xff]
        %v363 = vld [vmem:[#allocation8 + $0x60] sm:$0xff]
        %v364 = vld [vmem:[#allocation8 + $0x68] sm:$0xff]
        %v365 = vld [vmem:[#allocation8 + $0x70] sm:$0xff]
        %v366 = vld [vmem:[#allocation8 + $0x78] sm:$0xff]
        %v367 = vld [vmem:[#allocation8 + $0x80] sm:$0xff]
        %v368 = vld [vmem:[#allocation8 + $0x88] sm:$0xff]
        %v369 = vld [vmem:[#allocation8 + $0x90] sm:$0xff]
        %v370 = vld [vmem:[#allocation8 + $0x98] sm:$0xff]
        %v371 = vld [vmem:[#allocation8 + $0xa0] sm:$0xff]
        %v372 = vld [vmem:[#allocation8 + $0xa8] sm:$0xff]
        %v373 = vld [vmem:[#allocation8 + $0xb0] sm:$0xff]
        %v374 = vld [vmem:[#allocation8 + $0xb8] sm:$0xff]
        %v375 = vld [vmem:[#allocation8 + $0xc0] sm:$0xff]
        %v376 = vld [vmem:[#allocation8 + $0xc8] sm:$0xff]
        %v377 = vld [vmem:[#allocation8 + $0xd0] sm:$0xff]
        %v378 = vld [vmem:[#allocation8 + $0xd8] sm:$0xff]
        %v379 = vld [vmem:[#allocation8 + $0xe0] sm:$0xff]
        %v380 = vld [vmem:[#allocation8 + $0xe8] sm:$0xff]
        %v381 = vld [vmem:[#allocation8 + $0xf0] sm:$0xff]
        %v382 = vld [vmem:[#allocation8 + $0xf8] sm:$0xff]
        %v383 = vld [vmem:[#allocation8 + $0x100] sm:$0xff]
        %v384 = vld [vmem:[#allocation8 + $0x108] sm:$0xff]
        %v385 = vld [vmem:[#allocation8 + $0x110] sm:$0xff]
        %v386 = vld [vmem:[#allocation8 + $0x118] sm:$0xff]
        %v387 = vld [vmem:[#allocation8 + $0x120] sm:$0xff]
        %v388 = vld [vmem:[#allocation8 + $0x128] sm:$0xff]
        %v389 = vld [vmem:[#allocation8 + $0x130] sm:$0xff]
        %v390 = vld [vmem:[#allocation8 + $0x138] sm:$0xff]
        %v391 = vld [vmem:[#allocation8 + $0x140] sm:$0xff]
        %v392 = vld [vmem:[#allocation8 + $0x148] sm:$0xff]
        %v393 = vld [vmem:[#allocation8 + $0x150] sm:$0xff]
        %v394 = vld [vmem:[#allocation8 + $0x158] sm:$0xff]
        %v395 = vld [vmem:[#allocation8 + $0x160] sm:$0xff]
        %v396 = vld [vmem:[#allocation8 + $0x168] sm:$0xff]
        %v397 = vld [vmem:[#allocation8 + $0x170] sm:$0xff]
        %v398 = vld [vmem:[#allocation8 + $0x178] sm:$0xff]
        %v399 = vld [vmem:[#allocation8 + $0x180] sm:$0xff]
        %v400 = vld [vmem:[#allocation8 + $0x188] sm:$0xff]
        %v401 = vld [vmem:[#allocation8 + $0x190] sm:$0xff]
        %v402 = vld [vmem:[#allocation8 + $0x198] sm:$0xff]
        %v403 = vld [vmem:[#allocation8 + $0x1a0] sm:$0xff]
        %v404 = vld [vmem:[#allocation8 + $0x1a8] sm:$0xff]
        %v405 = vld [vmem:[#allocation8 + $0x1b0] sm:$0xff]
        %v406 = vld [vmem:[#allocation8 + $0x1b8] sm:$0xff]
        %v407 = vld [vmem:[#allocation8 + $0x1c0] sm:$0xff]
        %v408 = vld [vmem:[#allocation8 + $0x1c8] sm:$0xff]
        %v409 = vld [vmem:[#allocation8 + $0x1d0] sm:$0xff]
        %v410 = vld [vmem:[#allocation8 + $0x1d8] sm:$0xff]
        %v411 = vld [vmem:[#allocation8 + $0x1e0] sm:$0xff]
        %v412 = vld [vmem:[#allocation8 + $0x1e8] sm:$0xff]
        %v413 = vld [vmem:[#allocation8 + $0x1f0] sm:$0xff]
        %v414 = vld [vmem:[#allocation8 + $0x1f8] sm:$0xff]
        %v415 = vld [vmem:[%s4] sm:$0xf]
        %v417 = vlaneseq
        %v418 = vshrl.u32 %v417, 7
        %v419 = vsub.s32 0, %v418
        %v420 = vrot.slane %v415, %v419
        %v421 = vlaneseq
        %v422 = vshrl.u32 %v421, 7
        %v423 = vsub.s32 1, %v422
        %v424 = vrot.slane %v415, %v423
        %v425 = vlaneseq
        %v426 = vshrl.u32 %v425, 7
        %v427 = vsub.s32 2, %v426
        %v428 = vrot.slane %v415, %v427
        %v429 = vlaneseq
        %v430 = vshrl.u32 %v429, 7
        %v431 = vsub.s32 3, %v430
        %v432 = vrot.slane %v415, %v431
        %v438 = vunpack.c.l.b16 %v350
        %v439 = vunpack.c.h.b16 %v350
        %v440 = vpack.c.b16 %v438, %v438
        %v441 = vpack.c.b16 %v439, %v439
        %v508 = vunpack.c.l.b16 %v351
        %v509 = vunpack.c.h.b16 %v351
        %v510 = vunpack.c.l.b16 %v352
        %v511 = vunpack.c.h.b16 %v352
        %v512 = vunpack.c.l.b16 %v353
        %v513 = vunpack.c.h.b16 %v353
        %v514 = vunpack.c.l.b16 %v354
        %v515 = vunpack.c.h.b16 %v354
        %v516 = vunpack.c.l.b16 %v355
        %v517 = vunpack.c.h.b16 %v355
        %v518 = vunpack.c.l.b16 %v356
        %v519 = vunpack.c.h.b16 %v356
        %v520 = vunpack.c.l.b16 %v357
        %v521 = vunpack.c.h.b16 %v357
        %v522 = vunpack.c.l.b16 %v358
        %v523 = vunpack.c.h.b16 %v358
        %v524 = vunpack.c.l.b16 %v359
        %v525 = vunpack.c.h.b16 %v359
        %v526 = vunpack.c.l.b16 %v360
        %v527 = vunpack.c.h.b16 %v360
        %v528 = vunpack.c.l.b16 %v361
        %v529 = vunpack.c.h.b16 %v361
        %v530 = vunpack.c.l.b16 %v362
        %v531 = vunpack.c.h.b16 %v362
        %v532 = vunpack.c.l.b16 %v363
        %v533 = vunpack.c.h.b16 %v363
        %v534 = vunpack.c.l.b16 %v364
        %v535 = vunpack.c.h.b16 %v364
        %v536 = vunpack.c.l.b16 %v365
        %v537 = vunpack.c.h.b16 %v365
        %v538 = vunpack.c.l.b16 %v366
        %v539 = vunpack.c.h.b16 %v366
        %v540 = vunpack.c.l.b16 %v367
        %v541 = vunpack.c.h.b16 %v367
        %v542 = vunpack.c.l.b16 %v368
        %v543 = vunpack.c.h.b16 %v368
        %v544 = vunpack.c.l.b16 %v369
        %v545 = vunpack.c.h.b16 %v369
        %v546 = vunpack.c.l.b16 %v370
        %v547 = vunpack.c.h.b16 %v370
        %v548 = vunpack.c.l.b16 %v371
        %v549 = vunpack.c.h.b16 %v371
        %v550 = vunpack.c.l.b16 %v372
        %v551 = vunpack.c.h.b16 %v372
        %v552 = vunpack.c.l.b16 %v373
        %v553 = vunpack.c.h.b16 %v373
        %v554 = vunpack.c.l.b16 %v374
        %v555 = vunpack.c.h.b16 %v374
        %v556 = vunpack.c.l.b16 %v375
        %v557 = vunpack.c.h.b16 %v375
        %v558 = vunpack.c.l.b16 %v376
        %v559 = vunpack.c.h.b16 %v376
        %v560 = vunpack.c.l.b16 %v377
        %v561 = vunpack.c.h.b16 %v377
        %v562 = vunpack.c.l.b16 %v378
        %v563 = vunpack.c.h.b16 %v378
        %v564 = vunpack.c.l.b16 %v379
        %v565 = vunpack.c.h.b16 %v379
        %v566 = vunpack.c.l.b16 %v380
        %v567 = vunpack.c.h.b16 %v380
        %v568 = vunpack.c.l.b16 %v381
        %v569 = vunpack.c.h.b16 %v381
        %v570 = vunpack.c.l.b16 %v382
        %v571 = vunpack.c.h.b16 %v382
        %v572 = vunpack.c.l.b16 %v383
        %v573 = vunpack.c.h.b16 %v383
        %v574 = vunpack.c.l.b16 %v384
        %v575 = vunpack.c.h.b16 %v384
        %v576 = vunpack.c.l.b16 %v385
        %v577 = vunpack.c.h.b16 %v385
        %v578 = vunpack.c.l.b16 %v386
        %v579 = vunpack.c.h.b16 %v386
        %v580 = vunpack.c.l.b16 %v387
        %v581 = vunpack.c.h.b16 %v387
        %v582 = vunpack.c.l.b16 %v388
        %v583 = vunpack.c.h.b16 %v388
        %v584 = vunpack.c.l.b16 %v389
        %v585 = vunpack.c.h.b16 %v389
        %v586 = vunpack.c.l.b16 %v390
        %v587 = vunpack.c.h.b16 %v390
        %v588 = vunpack.c.l.b16 %v391
        %v589 = vunpack.c.h.b16 %v391
        %v590 = vunpack.c.l.b16 %v392
        %v591 = vunpack.c.h.b16 %v392
        %v592 = vunpack.c.l.b16 %v393
        %v593 = vunpack.c.h.b16 %v393
        %v594 = vunpack.c.l.b16 %v394
        %v595 = vunpack.c.h.b16 %v394
        %v596 = vunpack.c.l.b16 %v395
        %v597 = vunpack.c.h.b16 %v395
        %v598 = vunpack.c.l.b16 %v396
        %v599 = vunpack.c.h.b16 %v396
        %v600 = vunpack.c.l.b16 %v397
        %v601 = vunpack.c.h.b16 %v397
        %v602 = vunpack.c.l.b16 %v398
        %v603 = vunpack.c.h.b16 %v398
        %v604 = vunpack.c.l.b16 %v399
        %v605 = vunpack.c.h.b16 %v399
        %v606 = vunpack.c.l.b16 %v400
        %v607 = vunpack.c.h.b16 %v400
        %v608 = vunpack.c.l.b16 %v401
        %v609 = vunpack.c.h.b16 %v401
        %v610 = vunpack.c.l.b16 %v402
        %v611 = vunpack.c.h.b16 %v402
        %v612 = vunpack.c.l.b16 %v403
        %v613 = vunpack.c.h.b16 %v403
        %v614 = vunpack.c.l.b16 %v404
        %v615 = vunpack.c.h.b16 %v404
        %v616 = vunpack.c.l.b16 %v405
        %v617 = vunpack.c.h.b16 %v405
        %v618 = vunpack.c.l.b16 %v406
        %v619 = vunpack.c.h.b16 %v406
        %v620 = vunpack.c.l.b16 %v407
        %v621 = vunpack.c.h.b16 %v407
        %v622 = vunpack.c.l.b16 %v408
        %v623 = vunpack.c.h.b16 %v408
        %v624 = vunpack.c.l.b16 %v409
        %v625 = vunpack.c.h.b16 %v409
        %v626 = vunpack.c.l.b16 %v410
        %v627 = vunpack.c.h.b16 %v410
        %v628 = vunpack.c.l.b16 %v411
        %v629 = vunpack.c.h.b16 %v411
        %v630 = vunpack.c.l.b16 %v412
        %v631 = vunpack.c.h.b16 %v412
        %v632 = vunpack.c.l.b16 %v413
        %v633 = vunpack.c.h.b16 %v413
        %v634 = vunpack.c.l.b16 %v414
        %v635 = vunpack.c.h.b16 %v414
        %v636 = vpack.c.b16 %v512, %v508
        %v637 = vpack.c.b16 %v513, %v509
        %v638 = vpack.c.b16 %v514, %v510
        %v639 = vpack.c.b16 %v515, %v511
        %v640 = vpack.c.b16 %v520, %v516
        %v641 = vpack.c.b16 %v521, %v517
        %v642 = vpack.c.b16 %v522, %v518
        %v643 = vpack.c.b16 %v523, %v519
        %v644 = vpack.c.b16 %v528, %v524
        %v645 = vpack.c.b16 %v529, %v525
        %v646 = vpack.c.b16 %v530, %v526
        %v647 = vpack.c.b16 %v531, %v527
        %v648 = vpack.c.b16 %v536, %v532
        %v649 = vpack.c.b16 %v537, %v533
        %v650 = vpack.c.b16 %v538, %v534
        %v651 = vpack.c.b16 %v539, %v535
        %v652 = vpack.c.b16 %v544, %v540
        %v653 = vpack.c.b16 %v545, %v541
        %v654 = vpack.c.b16 %v546, %v542
        %v655 = vpack.c.b16 %v547, %v543
        %v656 = vpack.c.b16 %v552, %v548
        %v657 = vpack.c.b16 %v553, %v549
        %v658 = vpack.c.b16 %v554, %v550
        %v659 = vpack.c.b16 %v555, %v551
        %v660 = vpack.c.b16 %v560, %v556
        %v661 = vpack.c.b16 %v561, %v557
        %v662 = vpack.c.b16 %v562, %v558
        %v663 = vpack.c.b16 %v563, %v559
        %v664 = vpack.c.b16 %v568, %v564
        %v665 = vpack.c.b16 %v569, %v565
        %v666 = vpack.c.b16 %v570, %v566
        %v667 = vpack.c.b16 %v571, %v567
        %v668 = vpack.c.b16 %v576, %v572
        %v669 = vpack.c.b16 %v577, %v573
        %v670 = vpack.c.b16 %v578, %v574
        %v671 = vpack.c.b16 %v579, %v575
        %v672 = vpack.c.b16 %v584, %v580
        %v673 = vpack.c.b16 %v585, %v581
        %v674 = vpack.c.b16 %v586, %v582
        %v675 = vpack.c.b16 %v587, %v583
        %v676 = vpack.c.b16 %v592, %v588
        %v677 = vpack.c.b16 %v593, %v589
        %v678 = vpack.c.b16 %v594, %v590
        %v679 = vpack.c.b16 %v595, %v591
        %v680 = vpack.c.b16 %v600, %v596
        %v681 = vpack.c.b16 %v601, %v597
        %v682 = vpack.c.b16 %v602, %v598
        %v683 = vpack.c.b16 %v603, %v599
        %v684 = vpack.c.b16 %v608, %v604
        %v685 = vpack.c.b16 %v609, %v605
        %v686 = vpack.c.b16 %v610, %v606
        %v687 = vpack.c.b16 %v611, %v607
        %v688 = vpack.c.b16 %v616, %v612
        %v689 = vpack.c.b16 %v617, %v613
        %v690 = vpack.c.b16 %v618, %v614
        %v691 = vpack.c.b16 %v619, %v615
        %v692 = vpack.c.b16 %v624, %v620
        %v693 = vpack.c.b16 %v625, %v621
        %v694 = vpack.c.b16 %v626, %v622
        %v695 = vpack.c.b16 %v627, %v623
        %v696 = vpack.c.b16 %v632, %v628
        %v697 = vpack.c.b16 %v633, %v629
        %v698 = vpack.c.b16 %v634, %v630
        %v699 = vpack.c.b16 %v635, %v631
        %764 = vmatprep.subr.bf16.mxu0 %v637
        %765 = vmatpush1.bf16.msra.mxu0 %v636
        %766 = vmatprep.subr.bf16.mxu0 %v641
        %767 = vmatpush1.bf16.msra.mxu0 %v640
        %768 = vmatprep.subr.bf16.mxu0 %v645
        %769 = vmatpush1.bf16.msra.mxu0 %v644
        %770 = vmatprep.subr.bf16.mxu0 %v649
        %771 = vmatpush1.bf16.msra.mxu0 %v648
        %772 = vmatprep.subr.bf16.mxu0 %v653
        %773 = vmatpush1.bf16.msra.mxu0 %v652
        %774 = vmatprep.subr.bf16.mxu0 %v657
        %775 = vmatpush1.bf16.msra.mxu0 %v656
        %776 = vmatprep.subr.bf16.mxu0 %v661
        %777 = vmatpush1.bf16.msra.mxu0 %v660
        %778 = vmatprep.subr.bf16.mxu0 %v665
        %779 = vmatpush1.bf16.msra.mxu0 %v664
        %780 = vmatprep.subr.bf16.mxu0 %v669
        %781 = vmatpush1.bf16.msra.mxu0 %v668
        %782 = vmatprep.subr.bf16.mxu0 %v673
        %783 = vmatpush1.bf16.msra.mxu0 %v672
        %784 = vmatprep.subr.bf16.mxu0 %v677
        %785 = vmatpush1.bf16.msra.mxu0 %v676
        %786 = vmatprep.subr.bf16.mxu0 %v681
        %787 = vmatpush1.bf16.msra.mxu0 %v680
        %788 = vmatprep.subr.bf16.mxu0 %v685
        %789 = vmatpush1.bf16.msra.mxu0 %v684
        %790 = vmatprep.subr.bf16.mxu0 %v689
        %791 = vmatpush1.bf16.msra.mxu0 %v688
        %792 = vmatprep.subr.bf16.mxu0 %v693
        %793 = vmatpush1.bf16.msra.mxu0 %v692
        %794 = vmatprep.subr.bf16.mxu0 %v697
        %795 = vmatpush1.bf16.msra.mxu0 %v696
        %796 = vmatprep.mubr.bf16.mxu0 %v441
        %797 = vmatmul.mubr.bf16.gmra.mrb[0].mxu0 %v440
        %v798 = vpop.f32.mrb[0].mxu0
        %v799 = vadd.f32 %v420, %v798
        %v800 = vpop.f32.mrb[0].mxu0
        %v801 = vadd.f32 %v424, %v800
        %v802 = vpop.f32.mrb[0].mxu0
        %v803 = vpop.f32.mrb[0].mxu0
        %804 = vdwg.mxu0
        %805 = vmatprep.subr.bf16.mxu0 %v639
        %806 = vmatpush1.bf16.msra.mxu0 %v638
        %807 = vmatprep.subr.bf16.mxu0 %v643
        %808 = vmatpush1.bf16.msra.mxu0 %v642
        %809 = vmatprep.subr.bf16.mxu0 %v647
        %810 = vmatpush1.bf16.msra.mxu0 %v646
        %811 = vmatprep.subr.bf16.mxu0 %v651
        %812 = vmatpush1.bf16.msra.mxu0 %v650
        %813 = vmatprep.subr.bf16.mxu0 %v655
        %814 = vmatpush1.bf16.msra.mxu0 %v654
        %815 = vmatprep.subr.bf16.mxu0 %v659
        %816 = vmatpush1.bf16.msra.mxu0 %v658
        %817 = vmatprep.subr.bf16.mxu0 %v663
        %818 = vmatpush1.bf16.msra.mxu0 %v662
        %819 = vmatprep.subr.bf16.mxu0 %v667
        %820 = vmatpush1.bf16.msra.mxu0 %v666
        %821 = vmatprep.subr.bf16.mxu0 %v671
        %822 = vmatpush1.bf16.msra.mxu0 %v670
        %823 = vmatprep.subr.bf16.mxu0 %v675
        %824 = vmatpush1.bf16.msra.mxu0 %v674
        %825 = vmatprep.subr.bf16.mxu0 %v679
        %826 = vmatpush1.bf16.msra.mxu0 %v678
        %827 = vmatprep.subr.bf16.mxu0 %v683
        %828 = vmatpush1.bf16.msra.mxu0 %v682
        %829 = vmatprep.subr.bf16.mxu0 %v687
        %830 = vmatpush1.bf16.msra.mxu0 %v686
        %831 = vmatprep.subr.bf16.mxu0 %v691
        %832 = vmatpush1.bf16.msra.mxu0 %v690
        %833 = vmatprep.subr.bf16.mxu0 %v695
        %834 = vmatpush1.bf16.msra.mxu0 %v694
        %835 = vmatprep.subr.bf16.mxu0 %v699
        %836 = vmatpush1.bf16.msra.mxu0 %v698
        %837 = vmatprep.mubr.bf16.mxu0 %v441
        %838 = vmatmul.mubr.bf16.gmra.mrb[0].mxu0 %v440
        %v839 = vpop.f32.mrb[0].mxu0
        %v840 = vadd.f32 %v428, %v839
        %v841 = vpop.f32.mrb[0].mxu0
        %v842 = vadd.f32 %v432, %v841
        %v843 = vpop.f32.mrb[0].mxu0
        %v844 = vpop.f32.mrb[0].mxu0
        %845 = vdwg.mxu0
        %v846 = vxor.u32 %v799, 2147483648
        %v847 = vxor.u32 %v801, 2147483648
        %v848 = vxor.u32 %v840, 2147483648
        %v849 = vmul.f32 %v846, 1.442695
        %v850 = vpow.pop %v849
        %v851 = vmul.f32 %v847, 1.442695
        %v852 = vpow.pop %v851
        %v853 = vmul.f32 %v848, 1.442695
        %v854 = vpow.pop %v853
        %v855 = vadd.f32 %v850, 1.0
        %v856 = vadd.f32 %v852, 1.0
        %v857 = vadd.f32 %v854, 1.0
        %v858 = vrcp.pop %v855
        %v859 = vmul.f32 1.0, %v858
        %v860 = vrcp.pop %v856
        %v861 = vmul.f32 1.0, %v860
        %v862 = vrcp.pop %v857
        %v863 = vmul.f32 1.0, %v862
        %v864 = vtanh.pop %v842
        %v865 = vld [vmem:[%s295] sm:$0xff]
        %v866 = vmul.f32 %v865, %v859
        %v867 = vmul.f32 %v861, %v864
        %v868 = vadd.f32 %v866, %v867
        %v869 = vtanh.pop %v868
        %v870 = vmul.f32 %v863, %v869
        %v871 = vpack.c.bf16 %v870, %v870
        %872 = vst [vmem:[%s334] sm:$0xf] %v871
        %873 = vst [vmem:[%s341] sm:$0xff] %v868
        %s874 = sand.u32 %s158, 1
        %s875 = scalar_lea.sflag [#allocation5], %s874
        %s876 = sand.u32 %s158, 1
        %s877 = smul.addr %s876, 4
        %s878 = scalar_lea.vmem [#allocation9], %s877
        %s879 = sand.u32 %s184, 1
        %s880 = scalar_lea.sflag [#allocation11], %s879
        %s881 = sand.u32 %s184, 1
        %s882 = smul.addr %s881, 8
        %s883 = scalar_lea.vmem [#allocation10], %s882
        // Predicated region
        $region53: #{tpu_custom_call.1} parent=39 // pred_check
          %p884 = pneg %p168
        $region54: #{tpu_custom_call.1} parent=39 // pred_check_branch
          %886 = sbr.rel (%p884) target = $region56
        $region55: #{tpu_custom_call.1} parent=39 // pred_region
          %s888 = ssub.s32 64, 64
          %889 = vsyncadd %s875, %s888
          %s890 = smul.addr %s30, 64
          %s891 = scalar_lea.hbm %s5, %s890
          %s893 = sshll.u32 %s878, 4
          %s894 = int_to_ptr.vmem [resolvable:$true] %s893
          %896 = dma.vmem_to_hbm [thread:$0]  %s894, 64, %s891, %s875
        $region56: #{tpu_custom_call.1} parent=39 // pred_fallthru
          _
        // Predicated region
        $region57: #{tpu_custom_call.1} parent=39 // pred_check
          %p897 = pneg %p194
        $region58: #{tpu_custom_call.1} parent=39 // pred_check_branch
          %899 = sbr.rel (%p897) target = $region60
        $region59: #{tpu_custom_call.1} parent=39 // pred_region
          %s901 = ssub.s32 128, 128
          %902 = vsyncadd %s880, %s901
          %s903 = smul.addr %s30, 128
          %s904 = scalar_lea.hbm %s6, %s903
          %s906 = sshll.u32 %s883, 4
          %s907 = int_to_ptr.vmem [resolvable:$true] %s906
          %909 = dma.vmem_to_hbm [thread:$0]  %s907, 128, %s904, %s880
        $region60: #{tpu_custom_call.1} parent=39 // pred_fallthru
          _
      $region40: #{tpu_custom_call.1} parent=5 // pred_fallthru
        _
      %p910 = scmp.le.s32.totalorder 2, %s25
      // Predicated region
      $region61: #{tpu_custom_call.1} parent=5 // pred_check
        %p911 = pneg %p910
      $region62: #{tpu_custom_call.1} parent=5 // pred_check_branch
        %913 = sbr.rel (%p911) target = $region64
      $region63: #{tpu_custom_call.1} parent=5 // pred_region
        %s914 = ssub.s32 %s25, 2
        // Predicated region
        $region65: #{tpu_custom_call.1} parent=63 // pred_check
          %p915 = pneg %p174
        $region66: #{tpu_custom_call.1} parent=63 // pred_check_branch
          %917 = sbr.rel (%p915) target = $region68
        $region67: #{tpu_custom_call.1} parent=63 // pred_region
          %s918 = sand.u32 %s159, 1
          %s919 = scalar_lea.sflag [#allocation5], %s918
          %s920 = sand.u32 %s159, 1
          %s921 = smul.addr %s920, 4
          %s922 = scalar_lea.vmem [#allocation9], %s921
          %923 = dma.done %s919, 64
        $region68: #{tpu_custom_call.1} parent=63 // pred_fallthru
          _
        // Predicated region
        $region69: #{tpu_custom_call.1} parent=63 // pred_check
          %p924 = pneg %p200
        $region70: #{tpu_custom_call.1} parent=63 // pred_check_branch
          %926 = sbr.rel (%p924) target = $region72
        $region71: #{tpu_custom_call.1} parent=63 // pred_region
          %s927 = sand.u32 %s185, 1
          %s928 = scalar_lea.sflag [#allocation11], %s927
          %s929 = sand.u32 %s185, 1
          %s930 = smul.addr %s929, 8
          %s931 = scalar_lea.vmem [#allocation10], %s930
          %932 = dma.done %s928, 128
        $region72: #{tpu_custom_call.1} parent=63 // pred_fallthru
          _
      $region64: #{tpu_custom_call.1} parent=5 // pred_fallthru
        _
    $region6: #{tpu_custom_call.1} parent=1 // loop_footer
      %s29 = sadd.s32 1, %s25
    $region7: #{tpu_custom_call.1} parent=1 // loop_footer_branch
      %24 = sbr.rel target = $region3
    $region8: #{tpu_custom_call.1} parent=1 // loop_exit
      _
    %933 = vsyncpa [#allocation4], 1
    %s934 = scalar_lea.sflag [#allocation4], 1
    %935 = vsyncpa %s934, 1
    %936 = vsyncpa [#allocation7], 1
    %s937 = scalar_lea.sflag [#allocation7], 1
    %938 = vsyncpa %s937, 1
    %939 = vsyncpa [#allocation5], 1
    %s940 = scalar_lea.sflag [#allocation5], 1
    %941 = vsyncpa %s940, 1
    %942 = vsyncpa [#allocation11], 1
    %s943 = scalar_lea.sflag [#allocation11], 1
    %944 = vsyncpa %s943, 1

</llo_original>
